<compile_context>
chip_gen: v7x
topology: tpu7x:2x2x1
jax: 0.10.0
libtpu: 0.0.40
codegen_flags: <defaults>
</compile_context>

<pallas_src>
import jax
import jax.numpy as jnp
from jax.experimental import pallas as pl
from jax.experimental.pallas import tpu as pltpu


def _round_up(x, m):
    return (x + m - 1) // m * m


def _pad_to(x, shape):
    return jnp.pad(x, [(0, s - d) for d, s in zip(x.shape, shape)])


def encoder_rnn_kernel(idx_ref, h_ref, emb_ref, wih_ref, whh_ref,
                       bi_ref, bhn_ref, wout_ref, bout_ref,
                       out_ref, hnew_ref):
    """One fused bidirectional-GRU step + output Linear, entirely in VMEM."""
    Bp = idx_ref.shape[0]
    Vp = emb_ref.shape[0]
    Hp2 = h_ref.shape[1]          # 2 * Hp  ([h_f | h_b])

    # In-kernel embedding gather as a one-hot matmul (MXU-friendly, fully vectorized).
    onehot = (jax.lax.broadcasted_iota(jnp.int32, (Bp, Vp), 1)
              == idx_ref[...]).astype(jnp.float32)
    x = jnp.dot(onehot, emb_ref[...], preferred_element_type=jnp.float32)   # (Bp, Hp)

    h = h_ref[...]                                                          # (Bp, 2Hp)

    # Fused input projection for both directions; r/z biases already folded into bi_ref.
    gi = jnp.dot(x, wih_ref[...], preferred_element_type=jnp.float32) + bi_ref[...]
    # Block-diagonal hidden projection: [h_f | h_b] @ blkdiag(W_hh_f, W_hh_b).
    gh = jnp.dot(h, whh_ref[...], preferred_element_type=jnp.float32)

    r = jax.nn.sigmoid(gi[:, 0:Hp2] + gh[:, 0:Hp2])
    z = jax.nn.sigmoid(gi[:, Hp2:2 * Hp2] + gh[:, Hp2:2 * Hp2])
    n = jnp.tanh(gi[:, 2 * Hp2:3 * Hp2] + r * (gh[:, 2 * Hp2:3 * Hp2] + bhn_ref[...]))
    h_new = (1.0 - z) * n + z * h                                           # (Bp, 2Hp)

    hnew_ref[...] = h_new
    # Output Linear: h_new is already [h_f | h_b], so no lane concatenate is needed.
    out_ref[...] = (jnp.dot(h_new, wout_ref[...], preferred_element_type=jnp.float32)
                    + bout_ref[...])


def encoder_rnn_forward(indices, hidden, packed):
    """Equivalent of EncoderRNN.forward(in_put, hidden, Batch_size) (seq_len = 1)."""
    B = indices.shape[0]
    H = hidden.shape[2]
    Hp = packed["wout"].shape[1]
    Bp = _round_up(max(B, 8), 8)

    # Glue: pad indices / hidden into the lane-dense kernel layout.
    idx_p = jnp.zeros((Bp, 1), jnp.int32).at[:B, 0].set(indices.astype(jnp.int32))
    h_cat = jnp.zeros((Bp, 2 * Hp), jnp.float32)
    h_cat = h_cat.at[:B, :H].set(hidden[0])
    h_cat = h_cat.at[:B, Hp:Hp + H].set(hidden[1])

    vmem = pl.BlockSpec(memory_space=pltpu.MemorySpace.VMEM)
    out_p, hnew_cat = pl.pallas_call(
        encoder_rnn_kernel,
        out_shape=(jax.ShapeDtypeStruct((Bp, Hp), jnp.float32),
                   jax.ShapeDtypeStruct((Bp, 2 * Hp), jnp.float32)),
        in_specs=[vmem] * 9,
        out_specs=(vmem, vmem),
        input_output_aliases={1: 1},   # reuse the hidden slab for the new hidden
    )(idx_p, h_cat, packed["emb"], packed["wih"], packed["whh"],
      packed["b_i"], packed["b_hn"], packed["wout"], packed["b_out"])

    output = out_p[:B, :H][None]                                     # (1, B, H)
    h_new = jnp.stack([hnew_cat[:B, :H], hnew_cat[:B, Hp:Hp + H]])   # (2, B, H)
    return output, h_new


def make_params(key, input_size, hidden_size):
    """Standard PyTorch-layout parameters (gate order [r, z, n])."""
    H = hidden_size
    ks = jax.random.split(key, 11)
    s = 0.1
    return {
        "embedding": s * jax.random.normal(ks[0], (input_size, H), jnp.float32),
        "w_ih_f": s * jax.random.normal(ks[1], (3 * H, H), jnp.float32),
        "w_hh_f": s * jax.random.normal(ks[2], (3 * H, H), jnp.float32),
        "b_ih_f": s * jax.random.normal(ks[3], (3 * H,), jnp.float32),
        "b_hh_f": s * jax.random.normal(ks[4], (3 * H,), jnp.float32),
        "w_ih_b": s * jax.random.normal(ks[5], (3 * H, H), jnp.float32),
        "w_hh_b": s * jax.random.normal(ks[6], (3 * H, H), jnp.float32),
        "b_ih_b": s * jax.random.normal(ks[7], (3 * H,), jnp.float32),
        "b_hh_b": s * jax.random.normal(ks[8], (3 * H,), jnp.float32),
        "w_out": s * jax.random.normal(ks[9], (H, 2 * H), jnp.float32),
        "b_out": s * jax.random.normal(ks[10], (H,), jnp.float32),
    }


def pack_params(p):
    """Pack PyTorch-layout params into the fused, lane/sublane-padded kernel layout."""
    V, H = p["embedding"].shape
    Hp = _round_up(H, 128)
    Vp = _round_up(V, 128)

    def gate_w(w):  # (3H, H) -> 3 transposed, padded (Hp, Hp) blocks [r, z, n]
        wt = w.T
        return [_pad_to(wt[:, g * H:(g + 1) * H], (Hp, Hp)) for g in range(3)]

    def gate_b(b):  # (3H,) -> 3 padded (Hp,) blocks [r, z, n]
        return [_pad_to(b[g * H:(g + 1) * H], (Hp,)) for g in range(3)]

    wi_f, wi_b = gate_w(p["w_ih_f"]), gate_w(p["w_ih_b"])
    wh_f, wh_b = gate_w(p["w_hh_f"]), gate_w(p["w_hh_b"])
    bi_f, bi_b = gate_b(p["b_ih_f"]), gate_b(p["b_ih_b"])
    bh_f, bh_b = gate_b(p["b_hh_f"]), gate_b(p["b_hh_b"])

    # Fused input projection, gate layout [r_f r_b z_f z_b n_f n_b].
    wih = jnp.concatenate([wi_f[0], wi_b[0], wi_f[1], wi_b[1], wi_f[2], wi_b[2]], axis=1)
    # Block-diagonal hidden projection: rows 0:Hp act on h_f, rows Hp:2Hp on h_b.
    zero = jnp.zeros((Hp, Hp), jnp.float32)
    whh = jnp.concatenate([
        jnp.concatenate([wh_f[0], zero, wh_f[1], zero, wh_f[2], zero], axis=1),
        jnp.concatenate([zero, wh_b[0], zero, wh_b[1], zero, wh_b[2]], axis=1),
    ], axis=0)
    # Input-side bias with b_hh folded in for r/z; n keeps b_hh separate.
    b_i = jnp.concatenate([bi_f[0] + bh_f[0], bi_b[0] + bh_b[0],
                           bi_f[1] + bh_f[1], bi_b[1] + bh_b[1],
                           bi_f[2], bi_b[2]])[None, :]
    b_hn = jnp.concatenate([bh_f[2], bh_b[2]])[None, :]

    # Output Linear (2H -> H): rows 0:Hp consume h_f, rows Hp:2Hp consume h_b.
    wout_t = p["w_out"].T
    wout = jnp.concatenate([_pad_to(wout_t[:H], (Hp, Hp)),
                            _pad_to(wout_t[H:], (Hp, Hp))], axis=0)
    b_out = _pad_to(p["b_out"], (Hp,))[None, :]

    emb = _pad_to(p["embedding"], (Vp, Hp))

    return {"emb": emb, "wih": wih, "whh": whh, "b_i": b_i,
            "b_hn": b_hn, "wout": wout, "b_out": b_out}


def reference_forward(indices, hidden, p):
    """Plain-JAX reference with PyTorch GRU semantics (seq_len=1, bidirectional)."""
    emb = p["embedding"][indices]
    H = emb.shape[1]

    def gru_dir(x, h, w_ih, w_hh, b_ih, b_hh):
        gi = x @ w_ih.T + b_ih
        gh = h @ w_hh.T + b_hh
        r = jax.nn.sigmoid(gi[:, :H] + gh[:, :H])
        z = jax.nn.sigmoid(gi[:, H:2 * H] + gh[:, H:2 * H])
        n = jnp.tanh(gi[:, 2 * H:] + r * gh[:, 2 * H:])
        return (1.0 - z) * n + z * h

    h_f = gru_dir(emb, hidden[0], p["w_ih_f"], p["w_hh_f"], p["b_ih_f"], p["b_hh_f"])
    h_b = gru_dir(emb, hidden[1], p["w_ih_b"], p["w_hh_b"], p["b_ih_b"], p["b_hh_b"])
    cat = jnp.concatenate([h_f, h_b], axis=-1)
    out = cat @ p["w_out"].T + p["b_out"]
    return out[None], jnp.stack([h_f, h_b])


if __name__ == "__main__":
    input_size = 16    # vocab size
    hidden_size = 32
    batch_size = 4

    key = jax.random.PRNGKey(0)
    k_param, k_idx, k_idx2 = jax.random.split(key, 3)

    params = make_params(k_param, input_size, hidden_size)
    packed = pack_params(params)

    indices = jax.random.randint(k_idx, (batch_size,), 0, input_size)
    hidden0 = jnp.zeros((2, batch_size, hidden_size), jnp.float32)   # initHidden()

    fwd = jax.jit(encoder_rnn_forward)

    # Step 1: zero initial hidden (as in initHidden).
    out1, h1 = fwd(indices, hidden0, packed)
    out1 = jax.block_until_ready(out1)
    h1 = jax.block_until_ready(h1)
    out1_ref, h1_ref = reference_forward(indices, hidden0, params)
    assert out1.shape == (1, batch_size, hidden_size)
    assert h1.shape == (2, batch_size, hidden_size)
    assert jnp.allclose(out1, out1_ref, atol=1e-5), "output mismatch (step 1)"
    assert jnp.allclose(h1, h1_ref, atol=1e-5), "hidden mismatch (step 1)"

    # Step 2: feed the new hidden back (exercises the recurrent / block-diag path).
    indices2 = jax.random.randint(k_idx2, (batch_size,), 0, input_size)
    out2, h2 = fwd(indices2, h1, packed)
    out2 = jax.block_until_ready(out2)
    h2 = jax.block_until_ready(h2)
    out2_ref, h2_ref = reference_forward(indices2, h1_ref, params)
    assert jnp.allclose(out2, out2_ref, atol=1e-5), "output mismatch (step 2)"
    assert jnp.allclose(h2, h2_ref, atol=1e-5), "hidden mismatch (step 2)"

    print("KERNEL_OK")
</pallas_src>

<mosaic_0001>
module attributes {stable_mosaic.version = 11 : i64} {
  func.func @encoder_rnn_kernel(%arg0: memref<8x1xi32, #tpu.memory_space<vmem>>, %arg1: memref<8x256xf32, #tpu.memory_space<vmem>>, %arg2: memref<128x128xf32, #tpu.memory_space<vmem>>, %arg3: memref<128x768xf32, #tpu.memory_space<vmem>>, %arg4: memref<256x768xf32, #tpu.memory_space<vmem>>, %arg5: memref<1x768xf32, #tpu.memory_space<vmem>>, %arg6: memref<1x256xf32, #tpu.memory_space<vmem>>, %arg7: memref<256x128xf32, #tpu.memory_space<vmem>>, %arg8: memref<1x128xf32, #tpu.memory_space<vmem>>, %arg9: memref<8x128xf32, #tpu.memory_space<vmem>>, %arg10: memref<8x256xf32, #tpu.memory_space<vmem>>) attributes {dimension_semantics = [], scalar_prefetch = 0 : i64, scratch_operands = 0 : i64, tpu.core_type = #tpu.core_type<tc>} {
    %0 = tpu.iota {dimensions = array<i32: 1>} : vector<8x128xi32>
    %c0 = arith.constant 0 : index
    %c0_0 = arith.constant 0 : index
    %1 = vector.load %arg0[%c0, %c0_0] : memref<8x1xi32, #tpu.memory_space<vmem>>, vector<8x1xi32>
    %2 = vector.broadcast %1 : vector<8x1xi32> to vector<8x128xi32>
    %3 = arith.cmpi eq, %0, %2 : vector<8x128xi32>
    %4 = arith.extui %3 : vector<8x128xi1> to vector<8x128xi32>
    %5 = arith.sitofp %4 : vector<8x128xi32> to vector<8x128xf32>
    %c0_1 = arith.constant 0 : index
    %c0_2 = arith.constant 0 : index
    %6 = vector.load %arg2[%c0_1, %c0_2] : memref<128x128xf32, #tpu.memory_space<vmem>>, vector<128x128xf32>
    %cst = arith.constant dense<0.000000e+00> : vector<8x128xf32>
    %7 = tpu.matmul %5, %6, %cst {dimension_numbers = #tpu.dot_dimension_numbers<[1], [0], [0], [1], [0, 0, 1, 1], [], []>} : vector<8x128xf32>, vector<128x128xf32>, vector<8x128xf32> -> vector<8x128xf32>
    %c0_3 = arith.constant 0 : index
    %c0_4 = arith.constant 0 : index
    %8 = vector.load %arg1[%c0_3, %c0_4] : memref<8x256xf32, #tpu.memory_space<vmem>>, vector<8x256xf32>
    %c0_5 = arith.constant 0 : index
    %c0_6 = arith.constant 0 : index
    %9 = vector.load %arg3[%c0_5, %c0_6] : memref<128x768xf32, #tpu.memory_space<vmem>>, vector<128x768xf32>
    %cst_7 = arith.constant dense<0.000000e+00> : vector<8x768xf32>
    %10 = tpu.matmul %7, %9, %cst_7 {dimension_numbers = #tpu.dot_dimension_numbers<[1], [0], [0], [1], [0, 0, 1, 1], [], []>} : vector<8x128xf32>, vector<128x768xf32>, vector<8x768xf32> -> vector<8x768xf32>
    %c0_8 = arith.constant 0 : index
    %c0_9 = arith.constant 0 : index
    %11 = vector.load %arg5[%c0_8, %c0_9] : memref<1x768xf32, #tpu.memory_space<vmem>>, vector<1x768xf32>
    %12 = vector.broadcast %11 : vector<1x768xf32> to vector<8x768xf32>
    %13 = arith.addf %10, %12 : vector<8x768xf32>
    %c0_10 = arith.constant 0 : index
    %c0_11 = arith.constant 0 : index
    %14 = vector.load %arg4[%c0_10, %c0_11] : memref<256x768xf32, #tpu.memory_space<vmem>>, vector<256x768xf32>
    %cst_12 = arith.constant dense<0.000000e+00> : vector<8x768xf32>
    %15 = tpu.matmul %8, %14, %cst_12 {dimension_numbers = #tpu.dot_dimension_numbers<[1], [0], [0], [1], [0, 0, 1, 1], [], []>} : vector<8x256xf32>, vector<256x768xf32>, vector<8x768xf32> -> vector<8x768xf32>
    %16 = vector.extract_strided_slice %13 {offsets = [0, 0], sizes = [8, 256], strides = [1, 1]} : vector<8x768xf32> to vector<8x256xf32>
    %17 = vector.extract_strided_slice %15 {offsets = [0, 0], sizes = [8, 256], strides = [1, 1]} : vector<8x768xf32> to vector<8x256xf32>
    %18 = arith.addf %16, %17 : vector<8x256xf32>
    %19 = arith.negf %18 : vector<8x256xf32>
    %20 = math.exp %19 : vector<8x256xf32>
    %cst_13 = arith.constant 1.000000e+00 : f32
    %21 = vector.broadcast %cst_13 : f32 to vector<8x256xf32>
    %22 = arith.addf %21, %20 : vector<8x256xf32>
    %23 = arith.divf %21, %22 : vector<8x256xf32>
    %24 = vector.extract_strided_slice %13 {offsets = [0, 256], sizes = [8, 256], strides = [1, 1]} : vector<8x768xf32> to vector<8x256xf32>
    %25 = vector.extract_strided_slice %15 {offsets = [0, 256], sizes = [8, 256], strides = [1, 1]} : vector<8x768xf32> to vector<8x256xf32>
    %26 = arith.addf %24, %25 : vector<8x256xf32>
    %27 = arith.negf %26 : vector<8x256xf32>
    %28 = math.exp %27 : vector<8x256xf32>
    %cst_14 = arith.constant 1.000000e+00 : f32
    %29 = vector.broadcast %cst_14 : f32 to vector<8x256xf32>
    %30 = arith.addf %29, %28 : vector<8x256xf32>
    %31 = arith.divf %29, %30 : vector<8x256xf32>
    %32 = vector.extract_strided_slice %13 {offsets = [0, 512], sizes = [8, 256], strides = [1, 1]} : vector<8x768xf32> to vector<8x256xf32>
    %33 = vector.extract_strided_slice %15 {offsets = [0, 512], sizes = [8, 256], strides = [1, 1]} : vector<8x768xf32> to vector<8x256xf32>
    %c0_15 = arith.constant 0 : index
    %c0_16 = arith.constant 0 : index
    %34 = vector.load %arg6[%c0_15, %c0_16] : memref<1x256xf32, #tpu.memory_space<vmem>>, vector<1x256xf32>
    %35 = vector.broadcast %34 : vector<1x256xf32> to vector<8x256xf32>
    %36 = arith.addf %33, %35 : vector<8x256xf32>
    %37 = arith.mulf %23, %36 : vector<8x256xf32>
    %38 = arith.addf %32, %37 : vector<8x256xf32>
    %39 = math.tanh %38 : vector<8x256xf32>
    %cst_17 = arith.constant 1.000000e+00 : f32
    %40 = vector.broadcast %cst_17 : f32 to vector<8x256xf32>
    %41 = arith.subf %40, %31 : vector<8x256xf32>
    %42 = arith.mulf %41, %39 : vector<8x256xf32>
    %43 = arith.mulf %31, %8 : vector<8x256xf32>
    %44 = arith.addf %42, %43 : vector<8x256xf32>
    %c0_18 = arith.constant 0 : index
    %c0_19 = arith.constant 0 : index
    %45 = vector.load %arg10[%c0_18, %c0_19] : memref<8x256xf32, #tpu.memory_space<vmem>>, vector<8x256xf32>
    tpu.vector_store %arg10[%c0_18, %c0_19], %44 {strides = array<i32>} : memref<8x256xf32, #tpu.memory_space<vmem>>, vector<8x256xf32>,
    %c0_20 = arith.constant 0 : index
    %c0_21 = arith.constant 0 : index
    %46 = vector.load %arg7[%c0_20, %c0_21] : memref<256x128xf32, #tpu.memory_space<vmem>>, vector<256x128xf32>
    %cst_22 = arith.constant dense<0.000000e+00> : vector<8x128xf32>
    %47 = tpu.matmul %44, %46, %cst_22 {dimension_numbers = #tpu.dot_dimension_numbers<[1], [0], [0], [1], [0, 0, 1, 1], [], []>} : vector<8x256xf32>, vector<256x128xf32>, vector<8x128xf32> -> vector<8x128xf32>
    %c0_23 = arith.constant 0 : index
    %c0_24 = arith.constant 0 : index
    %48 = vector.load %arg8[%c0_23, %c0_24] : memref<1x128xf32, #tpu.memory_space<vmem>>, vector<1x128xf32>
    %49 = vector.broadcast %48 : vector<1x128xf32> to vector<8x128xf32>
    %50 = arith.addf %47, %49 : vector<8x128xf32>
    %c0_25 = arith.constant 0 : index
    %c0_26 = arith.constant 0 : index
    %51 = vector.load %arg9[%c0_25, %c0_26] : memref<8x128xf32, #tpu.memory_space<vmem>>, vector<8x128xf32>
    tpu.vector_store %arg9[%c0_25, %c0_26], %50 {strides = array<i32>} : memref<8x128xf32, #tpu.memory_space<vmem>>, vector<8x128xf32>,
    return
  }
}

</mosaic_0001>

<llo_original>
// kernel: encoder_rnn_forward.1
$region0: #{encoder_rnn_forward.1}
  #allocation0 [shape = 'u32[]', space=smem, size = 0x4, offset = 0x4, fixed_abs, tag = 'smem constant byte address 0x4 - core index']
  #allocation1 [shape = 'u32[144,128]{1,0:T(1,128)}', space=vmem, size = 0x12000, scoped, tag = 'internal scratch']
  %s0 = inlined_call_operand.vmem [shape: s32[8,1], index: 0, kind: input, shape index: {}]
  %s1 = inlined_call_operand.vmem [shape: f32[8,256], index: 1, kind: input, shape index: {}, may-alias: {1,10}]
  %s2 = inlined_call_operand.hbm [shape: f32[128,128], index: 2, kind: input, shape index: {}]
  %s3 = inlined_call_operand.hbm [shape: f32[128,768], index: 3, kind: input, shape index: {}]
  %s4 = inlined_call_operand.hbm [shape: f32[256,768], index: 4, kind: input, shape index: {}]
  %s5 = inlined_call_operand.vmem [shape: f32[1,768], index: 5, kind: input, shape index: {}]
  %s6 = inlined_call_operand.vmem [shape: f32[1,256], index: 6, kind: input, shape index: {}]
  %s7 = inlined_call_operand.hbm [shape: f32[256,128], index: 7, kind: input, shape index: {}]
  %s8 = inlined_call_operand.vmem [shape: f32[1,128], index: 8, kind: input, shape index: {}]
  %s9 = inlined_call_operand.vmem [shape: f32[8,128], index: 9, kind: output, shape index: {0}]
  %s10 = inlined_call_operand.vmem [shape: f32[8,256], index: 10, kind: output, shape index: {1}, may-alias: {1,10}]
  %11 = xla_tuple %s9, %s10
  %s12 = sld [smem:[#allocation0]]
  $region70: #{encoder_rnn_forward.1} parent=0
    _
  %s14 = ssub.s32 1, %s12
  %s15 = scalar_select 0, %s14, %s12
  $region1: #{encoder_rnn_forward.1} parent=0
    #allocation2 [shape = 'u8[65536]{0}', space=vmem, size = 0x10000, scoped, tag = 'input window, operand 2, single buffered']
    #allocation3 [shape = 's32[1]{0}', space=sflag, size = 0x4, scoped, tag = 'scoped memory for encoder_rnn_forward.1']
    #allocation4 [shape = 'u8[393216]{0}', space=vmem, size = 0x60000, scoped, tag = 'input window, operand 3, single buffered']
    #allocation5 [shape = 's32[1]{0}', space=sflag, size = 0x4, scoped, tag = 'scoped memory for encoder_rnn_forward.1']
    #allocation6 [shape = 'u8[786432]{0}', space=vmem, size = 0xc0000, scoped, tag = 'input window, operand 4, single buffered']
    #allocation7 [shape = 'u8[131072]{0}', space=vmem, size = 0x20000, scoped, tag = 'input window, operand 7, single buffered']
    #allocation8 [shape = 's32[1]{0}', space=sflag, size = 0x4, scoped, tag = 'scoped memory for encoder_rnn_forward.1']
    %16 = vsyncpa [#allocation3], 0
    %17 = vsyncpa [#allocation5], 0
    %18 = vsyncpa [#allocation8], 0
    // Predicated region
    $region2: #{encoder_rnn_forward.1} parent=1 // pred_check
      _
    $region3: #{encoder_rnn_forward.1} parent=1 // pred_check_branch
      %20 = sbr.rel (0) target = $region5
    $region4: #{encoder_rnn_forward.1} parent=1 // pred_region
      _
    $region5: #{encoder_rnn_forward.1} parent=1 // pred_fallthru
      _
    // Predicated region
    $region6: #{encoder_rnn_forward.1} parent=1 // pred_check
      _
    $region7: #{encoder_rnn_forward.1} parent=1 // pred_check_branch
      %22 = sbr.rel (0) target = $region9
    $region8: #{encoder_rnn_forward.1} parent=1 // pred_region
      _
    $region9: #{encoder_rnn_forward.1} parent=1 // pred_fallthru
      _
    // Predicated region
    $region10: #{encoder_rnn_forward.1} parent=1 // pred_check
      _
    $region11: #{encoder_rnn_forward.1} parent=1 // pred_check_branch
      %24 = sbr.rel (0) target = $region13
    $region12: #{encoder_rnn_forward.1} parent=1 // pred_region
      %s26 = ssub.s32 2048, 2048
      %27 = vsyncadd [#allocation3], %s26
      %s28 = sshll.u32 [#allocation2], 4
      %s29 = int_to_ptr.vmem [resolvable:$true] %s28
      %34 = dma.hbm_to_vmem [thread:$0]  %s2, 2048, %s29, [#allocation3], 128, 128, 8
    $region13: #{encoder_rnn_forward.1} parent=1 // pred_fallthru
      _
    // Predicated region
    $region14: #{encoder_rnn_forward.1} parent=1 // pred_check
      _
    $region15: #{encoder_rnn_forward.1} parent=1 // pred_check_branch
      %36 = sbr.rel (0) target = $region17
    $region16: #{encoder_rnn_forward.1} parent=1 // pred_region
      %s38 = ssub.s32 12288, 12288
      %39 = vsyncadd [#allocation5], %s38
      %s40 = sshll.u32 [#allocation4], 4
      %s41 = int_to_ptr.vmem [resolvable:$true] %s40
      %46 = dma.hbm_to_vmem [thread:$0]  %s3, 12288, %s41, [#allocation5], 768, 768, 48
    $region17: #{encoder_rnn_forward.1} parent=1 // pred_fallthru
      _
    // Predicated region
    $region18: #{encoder_rnn_forward.1} parent=1 // pred_check
      _
    $region19: #{encoder_rnn_forward.1} parent=1 // pred_check_branch
      %48 = sbr.rel (0) target = $region21
    $region20: #{encoder_rnn_forward.1} parent=1 // pred_region
      %s50 = ssub.s32 24576, 24576
      %51 = vsyncadd [#allocation5], %s50
      %s52 = sshll.u32 [#allocation6], 4
      %s53 = int_to_ptr.vmem [resolvable:$true] %s52
      %58 = dma.hbm_to_vmem [thread:$0]  %s4, 24576, %s53, [#allocation5], 768, 768, 48
    $region21: #{encoder_rnn_forward.1} parent=1 // pred_fallthru
      _
    // Predicated region
    $region22: #{encoder_rnn_forward.1} parent=1 // pred_check
      _
    $region23: #{encoder_rnn_forward.1} parent=1 // pred_check_branch
      %60 = sbr.rel (0) target = $region25
    $region24: #{encoder_rnn_forward.1} parent=1 // pred_region
      _
    $region25: #{encoder_rnn_forward.1} parent=1 // pred_fallthru
      _
    // Predicated region
    $region26: #{encoder_rnn_forward.1} parent=1 // pred_check
      _
    $region27: #{encoder_rnn_forward.1} parent=1 // pred_check_branch
      %62 = sbr.rel (0) target = $region29
    $region28: #{encoder_rnn_forward.1} parent=1 // pred_region
      _
    $region29: #{encoder_rnn_forward.1} parent=1 // pred_fallthru
      _
    // Predicated region
    $region30: #{encoder_rnn_forward.1} parent=1 // pred_check
      _
    $region31: #{encoder_rnn_forward.1} parent=1 // pred_check_branch
      %64 = sbr.rel (0) target = $region33
    $region32: #{encoder_rnn_forward.1} parent=1 // pred_region
      %s66 = ssub.s32 4096, 4096
      %67 = vsyncadd [#allocation8], %s66
      %s68 = sshll.u32 [#allocation7], 4
      %s69 = int_to_ptr.vmem [resolvable:$true] %s68
      %74 = dma.hbm_to_vmem [thread:$0]  %s7, 4096, %s69, [#allocation8], 128, 128, 8
    $region33: #{encoder_rnn_forward.1} parent=1 // pred_fallthru
      _
    // Predicated region
    $region34: #{encoder_rnn_forward.1} parent=1 // pred_check
      _
    $region35: #{encoder_rnn_forward.1} parent=1 // pred_check_branch
      %76 = sbr.rel (0) target = $region37
    $region36: #{encoder_rnn_forward.1} parent=1 // pred_region
      _
    $region37: #{encoder_rnn_forward.1} parent=1 // pred_fallthru
      _
    // Predicated region
    $region38: #{encoder_rnn_forward.1} parent=1 // pred_check
      _
    $region39: #{encoder_rnn_forward.1} parent=1 // pred_check_branch
      %78 = sbr.rel (0) target = $region41
    $region40: #{encoder_rnn_forward.1} parent=1 // pred_region
      %79 = dma.done [#allocation3], 2048
    $region41: #{encoder_rnn_forward.1} parent=1 // pred_fallthru
      _
    // Predicated region
    $region42: #{encoder_rnn_forward.1} parent=1 // pred_check
      _
    $region43: #{encoder_rnn_forward.1} parent=1 // pred_check_branch
      %81 = sbr.rel (0) target = $region45
    $region44: #{encoder_rnn_forward.1} parent=1 // pred_region
      %82 = dma.done [#allocation5], 12288
    $region45: #{encoder_rnn_forward.1} parent=1 // pred_fallthru
      _
    // Predicated region
    $region46: #{encoder_rnn_forward.1} parent=1 // pred_check
      _
    $region47: #{encoder_rnn_forward.1} parent=1 // pred_check_branch
      %84 = sbr.rel (0) target = $region49
    $region48: #{encoder_rnn_forward.1} parent=1 // pred_region
      %85 = dma.done [#allocation5], 24576
    $region49: #{encoder_rnn_forward.1} parent=1 // pred_fallthru
      _
    // Predicated region
    $region50: #{encoder_rnn_forward.1} parent=1 // pred_check
      _
    $region51: #{encoder_rnn_forward.1} parent=1 // pred_check_branch
      %87 = sbr.rel (0) target = $region53
    $region52: #{encoder_rnn_forward.1} parent=1 // pred_region
      %88 = dma.done [#allocation8], 4096
    $region53: #{encoder_rnn_forward.1} parent=1 // pred_fallthru
      _
    %v89 = vlaneseq
    %v90 = vand.u32 %v89, 127
    %v91 = vld [vmem:[%s0] sm:$0xff]
    %92 = vset.pattern.permute.xlu0 0
    %93 = vperm.xlu0 %92, %v91
    %v94 = vpop.permute.xlu0 %93
    %vm95 = vcmp.eq.s32.totalorder %v90, %v94
    %v96 = vsel %vm95, 1, 0
    %v97 = vcvt.s32.f32 %v96
    %v98 = vld [vmem:[#allocation2] sm:$0xff]
    %v99 = vld [vmem:[#allocation2 + $0x8] sm:$0xff]
    %v100 = vld [vmem:[#allocation2 + $0x10] sm:$0xff]
    %v101 = vld [vmem:[#allocation2 + $0x18] sm:$0xff]
    %v102 = vld [vmem:[#allocation2 + $0x20] sm:$0xff]
    %v103 = vld [vmem:[#allocation2 + $0x28] sm:$0xff]
    %v104 = vld [vmem:[#allocation2 + $0x30] sm:$0xff]
    %v105 = vld [vmem:[#allocation2 + $0x38] sm:$0xff]
    %v106 = vld [vmem:[#allocation2 + $0x40] sm:$0xff]
    %v107 = vld [vmem:[#allocation2 + $0x48] sm:$0xff]
    %v108 = vld [vmem:[#allocation2 + $0x50] sm:$0xff]
    %v109 = vld [vmem:[#allocation2 + $0x58] sm:$0xff]
    %v110 = vld [vmem:[#allocation2 + $0x60] sm:$0xff]
    %v111 = vld [vmem:[#allocation2 + $0x68] sm:$0xff]
    %v112 = vld [vmem:[#allocation2 + $0x70] sm:$0xff]
    %v113 = vld [vmem:[#allocation2 + $0x78] sm:$0xff]
    %114 = vmatprep.subr.mxu0 0.0
    %115 = vmatpush1.msra.mxu0 %v98
    %116 = vmatprep.subr.mxu0 0.0
    %117 = vmatpush1.msra.mxu0 %v99
    %118 = vmatprep.subr.mxu0 0.0
    %119 = vmatpush1.msra.mxu0 %v100
    %120 = vmatprep.subr.mxu0 0.0
    %121 = vmatpush1.msra.mxu0 %v101
    %122 = vmatprep.subr.mxu0 0.0
    %123 = vmatpush1.msra.mxu0 %v102
    %124 = vmatprep.subr.mxu0 0.0
    %125 = vmatpush1.msra.mxu0 %v103
    %126 = vmatprep.subr.mxu0 0.0
    %127 = vmatpush1.msra.mxu0 %v104
    %128 = vmatprep.subr.mxu0 0.0
    %129 = vmatpush1.msra.mxu0 %v105
    %130 = vmatprep.subr.mxu0 0.0
    %131 = vmatpush1.msra.mxu0 %v106
    %132 = vmatprep.subr.mxu0 0.0
    %133 = vmatpush1.msra.mxu0 %v107
    %134 = vmatprep.subr.mxu0 0.0
    %135 = vmatpush1.msra.mxu0 %v108
    %136 = vmatprep.subr.mxu0 0.0
    %137 = vmatpush1.msra.mxu0 %v109
    %138 = vmatprep.subr.mxu0 0.0
    %139 = vmatpush1.msra.mxu0 %v110
    %140 = vmatprep.subr.mxu0 0.0
    %141 = vmatpush1.msra.mxu0 %v111
    %142 = vmatprep.subr.mxu0 0.0
    %143 = vmatpush1.msra.mxu0 %v112
    %144 = vmatprep.subr.mxu0 0.0
    %145 = vmatpush1.msra.mxu0 %v113
    %146 = vmatprep.subr.mxu0 0.0
    %147 = vmatpush1.msra.mxu0 0.0
    %148 = vmatprep.subr.mxu0 0.0
    %149 = vmatpush1.msra.mxu0 0.0
    %150 = vmatprep.subr.mxu0 0.0
    %151 = vmatpush1.msra.mxu0 0.0
    %152 = vmatprep.subr.mxu0 0.0
    %153 = vmatpush1.msra.mxu0 0.0
    %154 = vmatprep.subr.mxu0 0.0
    %155 = vmatpush1.msra.mxu0 0.0
    %156 = vmatprep.subr.mxu0 0.0
    %157 = vmatpush1.msra.mxu0 0.0
    %158 = vmatprep.subr.mxu0 0.0
    %159 = vmatpush1.msra.mxu0 0.0
    %160 = vmatprep.subr.mxu0 0.0
    %161 = vmatpush1.msra.mxu0 0.0
    %162 = vmatprep.subr.mxu0 0.0
    %163 = vmatpush1.msra.mxu0 0.0
    %164 = vmatprep.subr.mxu0 0.0
    %165 = vmatpush1.msra.mxu0 0.0
    %166 = vmatprep.subr.mxu0 0.0
    %167 = vmatpush1.msra.mxu0 0.0
    %168 = vmatprep.subr.mxu0 0.0
    %169 = vmatpush1.msra.mxu0 0.0
    %170 = vmatprep.subr.mxu0 0.0
    %171 = vmatpush1.msra.mxu0 0.0
    %172 = vmatprep.subr.mxu0 0.0
    %173 = vmatpush1.msra.mxu0 0.0
    %174 = vmatprep.subr.mxu0 0.0
    %175 = vmatpush1.msra.mxu0 0.0
    %176 = vmatprep.subr.mxu0 0.0
    %177 = vmatpush1.msra.mxu0 0.0
    %178 = vmatprep.mubr.f32.mxu0 0.0
    %179 = vmatmul.mubr.f32.gmra.mrb[0].mxu0 %v97
    %v180 = vpop.f32.mrb[0].mxu0
    %v181 = vadd.f32 0.0, %v180
    %v182 = vpop.f32.mrb[0].mxu0
    %183 = vdwg.mxu0
    %v184 = vld [vmem:[%s1] sm:$0xff]
    %v185 = vld [vmem:[%s1 + $0x8] sm:$0xff]
    %v186 = vld [vmem:[#allocation4] sm:$0xff]
    %v187 = vld [vmem:[#allocation4 + $0x8] sm:$0xff]
    %v188 = vld [vmem:[#allocation4 + $0x10] sm:$0xff]
    %v189 = vld [vmem:[#allocation4 + $0x18] sm:$0xff]
    %v190 = vld [vmem:[#allocation4 + $0x20] sm:$0xff]
    %v191 = vld [vmem:[#allocation4 + $0x28] sm:$0xff]
    %v192 = vld [vmem:[#allocation4 + $0x30] sm:$0xff]
    %v193 = vld [vmem:[#allocation4 + $0x38] sm:$0xff]
    %v194 = vld [vmem:[#allocation4 + $0x40] sm:$0xff]
    %v195 = vld [vmem:[#allocation4 + $0x48] sm:$0xff]
    %v196 = vld [vmem:[#allocation4 + $0x50] sm:$0xff]
    %v197 = vld [vmem:[#allocation4 + $0x58] sm:$0xff]
    %v198 = vld [vmem:[#allocation4 + $0x60] sm:$0xff]
    %v199 = vld [vmem:[#allocation4 + $0x68] sm:$0xff]
    %v200 = vld [vmem:[#allocation4 + $0x70] sm:$0xff]
    %v201 = vld [vmem:[#allocation4 + $0x78] sm:$0xff]
    %v202 = vld [vmem:[#allocation4 + $0x80] sm:$0xff]
    %v203 = vld [vmem:[#allocation4 + $0x88] sm:$0xff]
    %v204 = vld [vmem:[#allocation4 + $0x90] sm:$0xff]
    %v205 = vld [vmem:[#allocation4 + $0x98] sm:$0xff]
    %v206 = vld [vmem:[#allocation4 + $0xa0] sm:$0xff]
    %v207 = vld [vmem:[#allocation4 + $0xa8] sm:$0xff]
    %v208 = vld [vmem:[#allocation4 + $0xb0] sm:$0xff]
    %v209 = vld [vmem:[#allocation4 + $0xb8] sm:$0xff]
    %v210 = vld [vmem:[#allocation4 + $0xc0] sm:$0xff]
    %v211 = vld [vmem:[#allocation4 + $0xc8] sm:$0xff]
    %v212 = vld [vmem:[#allocation4 + $0xd0] sm:$0xff]
    %v213 = vld [vmem:[#allocation4 + $0xd8] sm:$0xff]
    %v214 = vld [vmem:[#allocation4 + $0xe0] sm:$0xff]
    %v215 = vld [vmem:[#allocation4 + $0xe8] sm:$0xff]
    %v216 = vld [vmem:[#allocation4 + $0xf0] sm:$0xff]
    %v217 = vld [vmem:[#allocation4 + $0xf8] sm:$0xff]
    %v218 = vld [vmem:[#allocation4 + $0x100] sm:$0xff]
    %v219 = vld [vmem:[#allocation4 + $0x108] sm:$0xff]
    %v220 = vld [vmem:[#allocation4 + $0x110] sm:$0xff]
    %v221 = vld [vmem:[#allocation4 + $0x118] sm:$0xff]
    %v222 = vld [vmem:[#allocation4 + $0x120] sm:$0xff]
    %v223 = vld [vmem:[#allocation4 + $0x128] sm:$0xff]
    %v224 = vld [vmem:[#allocation4 + $0x130] sm:$0xff]
    %v225 = vld [vmem:[#allocation4 + $0x138] sm:$0xff]
    %v226 = vld [vmem:[#allocation4 + $0x140] sm:$0xff]
    %v227 = vld [vmem:[#allocation4 + $0x148] sm:$0xff]
    %v228 = vld [vmem:[#allocation4 + $0x150] sm:$0xff]
    %v229 = vld [vmem:[#allocation4 + $0x158] sm:$0xff]
    %v230 = vld [vmem:[#allocation4 + $0x160] sm:$0xff]
    %v231 = vld [vmem:[#allocation4 + $0x168] sm:$0xff]
    %v232 = vld [vmem:[#allocation4 + $0x170] sm:$0xff]
    %v233 = vld [vmem:[#allocation4 + $0x178] sm:$0xff]
    %v234 = vld [vmem:[#allocation4 + $0x180] sm:$0xff]
    %v235 = vld [vmem:[#allocation4 + $0x188] sm:$0xff]
    %v236 = vld [vmem:[#allocation4 + $0x190] sm:$0xff]
    %v237 = vld [vmem:[#allocation4 + $0x198] sm:$0xff]
    %v238 = vld [vmem:[#allocation4 + $0x1a0] sm:$0xff]
    %v239 = vld [vmem:[#allocation4 + $0x1a8] sm:$0xff]
    %v240 = vld [vmem:[#allocation4 + $0x1b0] sm:$0xff]
    %v241 = vld [vmem:[#allocation4 + $0x1b8] sm:$0xff]
    %v242 = vld [vmem:[#allocation4 + $0x1c0] sm:$0xff]
    %v243 = vld [vmem:[#allocation4 + $0x1c8] sm:$0xff]
    %v244 = vld [vmem:[#allocation4 + $0x1d0] sm:$0xff]
    %v245 = vld [vmem:[#allocation4 + $0x1d8] sm:$0xff]
    %v246 = vld [vmem:[#allocation4 + $0x1e0] sm:$0xff]
    %v247 = vld [vmem:[#allocation4 + $0x1e8] sm:$0xff]
    %v248 = vld [vmem:[#allocation4 + $0x1f0] sm:$0xff]
    %v249 = vld [vmem:[#allocation4 + $0x1f8] sm:$0xff]
    %v250 = vld [vmem:[#allocation4 + $0x200] sm:$0xff]
    %v251 = vld [vmem:[#allocation4 + $0x208] sm:$0xff]
    %v252 = vld [vmem:[#allocation4 + $0x210] sm:$0xff]
    %v253 = vld [vmem:[#allocation4 + $0x218] sm:$0xff]
    %v254 = vld [vmem:[#allocation4 + $0x220] sm:$0xff]
    %v255 = vld [vmem:[#allocation4 + $0x228] sm:$0xff]
    %v256 = vld [vmem:[#allocation4 + $0x230] sm:$0xff]
    %v257 = vld [vmem:[#allocation4 + $0x238] sm:$0xff]
    %v258 = vld [vmem:[#allocation4 + $0x240] sm:$0xff]
    %v259 = vld [vmem:[#allocation4 + $0x248] sm:$0xff]
    %v260 = vld [vmem:[#allocation4 + $0x250] sm:$0xff]
    %v261 = vld [vmem:[#allocation4 + $0x258] sm:$0xff]
    %v262 = vld [vmem:[#allocation4 + $0x260] sm:$0xff]
    %v263 = vld [vmem:[#allocation4 + $0x268] sm:$0xff]
    %v264 = vld [vmem:[#allocation4 + $0x270] sm:$0xff]
    %v265 = vld [vmem:[#allocation4 + $0x278] sm:$0xff]
    %v266 = vld [vmem:[#allocation4 + $0x280] sm:$0xff]
    %v267 = vld [vmem:[#allocation4 + $0x288] sm:$0xff]
    %v268 = vld [vmem:[#allocation4 + $0x290] sm:$0xff]
    %v269 = vld [vmem:[#allocation4 + $0x298] sm:$0xff]
    %v270 = vld [vmem:[#allocation4 + $0x2a0] sm:$0xff]
    %v271 = vld [vmem:[#allocation4 + $0x2a8] sm:$0xff]
    %v272 = vld [vmem:[#allocation4 + $0x2b0] sm:$0xff]
    %v273 = vld [vmem:[#allocation4 + $0x2b8] sm:$0xff]
    %v274 = vld [vmem:[#allocation4 + $0x2c0] sm:$0xff]
    %v275 = vld [vmem:[#allocation4 + $0x2c8] sm:$0xff]
    %v276 = vld [vmem:[#allocation4 + $0x2d0] sm:$0xff]
    %v277 = vld [vmem:[#allocation4 + $0x2d8] sm:$0xff]
    %v278 = vld [vmem:[#allocation4 + $0x2e0] sm:$0xff]
    %v279 = vld [vmem:[#allocation4 + $0x2e8] sm:$0xff]
    %v280 = vld [vmem:[#allocation4 + $0x2f0] sm:$0xff]
    %v281 = vld [vmem:[#allocation4 + $0x2f8] sm:$0xff]
    %v282 = vld [vmem:[%s5] sm:$0x3f]
    %v284 = vlaneseq
    %v285 = vshrl.u32 %v284, 7
    %v286 = vsub.s32 0, %v285
    %v287 = vrot.slane %v282, %v286
    %v288 = vlaneseq
    %v289 = vshrl.u32 %v288, 7
    %v290 = vsub.s32 1, %v289
    %v291 = vrot.slane %v282, %v290
    %v292 = vlaneseq
    %v293 = vshrl.u32 %v292, 7
    %v294 = vsub.s32 2, %v293
    %v295 = vrot.slane %v282, %v294
    %v296 = vlaneseq
    %v297 = vshrl.u32 %v296, 7
    %v298 = vsub.s32 3, %v297
    %v299 = vrot.slane %v282, %v298
    %v300 = vlaneseq
    %v301 = vshrl.u32 %v300, 7
    %v302 = vsub.s32 4, %v301
    %v303 = vrot.slane %v282, %v302
    %v304 = vlaneseq
    %v305 = vshrl.u32 %v304, 7
    %v306 = vsub.s32 5, %v305
    %v307 = vrot.slane %v282, %v306
    %314 = vmatprep.subr.mxu0 %v187
    %315 = vmatpush1.msra.mxu0 %v186
    %316 = vmatprep.subr.mxu0 %v193
    %317 = vmatpush1.msra.mxu0 %v192
    %318 = vmatprep.subr.mxu0 %v199
    %319 = vmatpush1.msra.mxu0 %v198
    %320 = vmatprep.subr.mxu0 %v205
    %321 = vmatpush1.msra.mxu0 %v204
    %322 = vmatprep.subr.mxu0 %v211
    %323 = vmatpush1.msra.mxu0 %v210
    %324 = vmatprep.subr.mxu0 %v217
    %325 = vmatpush1.msra.mxu0 %v216
    %326 = vmatprep.subr.mxu0 %v223
    %327 = vmatpush1.msra.mxu0 %v222
    %328 = vmatprep.subr.mxu0 %v229
    %329 = vmatpush1.msra.mxu0 %v228
    %330 = vmatprep.subr.mxu0 %v235
    %331 = vmatpush1.msra.mxu0 %v234
    %332 = vmatprep.subr.mxu0 %v241
    %333 = vmatpush1.msra.mxu0 %v240
    %334 = vmatprep.subr.mxu0 %v247
    %335 = vmatpush1.msra.mxu0 %v246
    %336 = vmatprep.subr.mxu0 %v253
    %337 = vmatpush1.msra.mxu0 %v252
    %338 = vmatprep.subr.mxu0 %v259
    %339 = vmatpush1.msra.mxu0 %v258
    %340 = vmatprep.subr.mxu0 %v265
    %341 = vmatpush1.msra.mxu0 %v264
    %342 = vmatprep.subr.mxu0 %v271
    %343 = vmatpush1.msra.mxu0 %v270
    %344 = vmatprep.subr.mxu0 %v277
    %345 = vmatpush1.msra.mxu0 %v276
    %346 = vmatprep.subr.mxu0 0.0
    %347 = vmatpush1.msra.mxu0 0.0
    %348 = vmatprep.subr.mxu0 0.0
    %349 = vmatpush1.msra.mxu0 0.0
    %350 = vmatprep.subr.mxu0 0.0
    %351 = vmatpush1.msra.mxu0 0.0
    %352 = vmatprep.subr.mxu0 0.0
    %353 = vmatpush1.msra.mxu0 0.0
    %354 = vmatprep.subr.mxu0 0.0
    %355 = vmatpush1.msra.mxu0 0.0
    %356 = vmatprep.subr.mxu0 0.0
    %357 = vmatpush1.msra.mxu0 0.0
    %358 = vmatprep.subr.mxu0 0.0
    %359 = vmatpush1.msra.mxu0 0.0
    %360 = vmatprep.subr.mxu0 0.0
    %361 = vmatpush1.msra.mxu0 0.0
    %362 = vmatprep.subr.mxu0 0.0
    %363 = vmatpush1.msra.mxu0 0.0
    %364 = vmatprep.subr.mxu0 0.0
    %365 = vmatpush1.msra.mxu0 0.0
    %366 = vmatprep.subr.mxu0 0.0
    %367 = vmatpush1.msra.mxu0 0.0
    %368 = vmatprep.subr.mxu0 0.0
    %369 = vmatpush1.msra.mxu0 0.0
    %370 = vmatprep.subr.mxu0 0.0
    %371 = vmatpush1.msra.mxu0 0.0
    %372 = vmatprep.subr.mxu0 0.0
    %373 = vmatpush1.msra.mxu0 0.0
    %374 = vmatprep.subr.mxu0 0.0
    %375 = vmatpush1.msra.mxu0 0.0
    %376 = vmatprep.subr.mxu0 0.0
    %377 = vmatpush1.msra.mxu0 0.0
    %378 = vmatprep.mubr.f32.mxu0 0.0
    %379 = vmatmul.mubr.f32.gmra.mrb[0].mxu0 %v181
    %v380 = vpop.f32.mrb[0].mxu0
    %v381 = vadd.f32 %v287, %v380
    %v382 = vpop.f32.mrb[0].mxu0
    %v383 = vadd.f32 %v291, %v382
    %384 = vdwg.mxu0
    %385 = vmatprep.subr.mxu0 %v189
    %386 = vmatpush1.msra.mxu0 %v188
    %387 = vmatprep.subr.mxu0 %v195
    %388 = vmatpush1.msra.mxu0 %v194
    %389 = vmatprep.subr.mxu0 %v201
    %390 = vmatpush1.msra.mxu0 %v200
    %391 = vmatprep.subr.mxu0 %v207
    %392 = vmatpush1.msra.mxu0 %v206
    %393 = vmatprep.subr.mxu0 %v213
    %394 = vmatpush1.msra.mxu0 %v212
    %395 = vmatprep.subr.mxu0 %v219
    %396 = vmatpush1.msra.mxu0 %v218
    %397 = vmatprep.subr.mxu0 %v225
    %398 = vmatpush1.msra.mxu0 %v224
    %399 = vmatprep.subr.mxu0 %v231
    %400 = vmatpush1.msra.mxu0 %v230
    %401 = vmatprep.subr.mxu0 %v237
    %402 = vmatpush1.msra.mxu0 %v236
    %403 = vmatprep.subr.mxu0 %v243
    %404 = vmatpush1.msra.mxu0 %v242
    %405 = vmatprep.subr.mxu0 %v249
    %406 = vmatpush1.msra.mxu0 %v248
    %407 = vmatprep.subr.mxu0 %v255
    %408 = vmatpush1.msra.mxu0 %v254
    %409 = vmatprep.subr.mxu0 %v261
    %410 = vmatpush1.msra.mxu0 %v260
    %411 = vmatprep.subr.mxu0 %v267
    %412 = vmatpush1.msra.mxu0 %v266
    %413 = vmatprep.subr.mxu0 %v273
    %414 = vmatpush1.msra.mxu0 %v272
    %415 = vmatprep.subr.mxu0 %v279
    %416 = vmatpush1.msra.mxu0 %v278
    %417 = vmatprep.subr.mxu0 0.0
    %418 = vmatpush1.msra.mxu0 0.0
    %419 = vmatprep.subr.mxu0 0.0
    %420 = vmatpush1.msra.mxu0 0.0
    %421 = vmatprep.subr.mxu0 0.0
    %422 = vmatpush1.msra.mxu0 0.0
    %423 = vmatprep.subr.mxu0 0.0
    %424 = vmatpush1.msra.mxu0 0.0
    %425 = vmatprep.subr.mxu0 0.0
    %426 = vmatpush1.msra.mxu0 0.0
    %427 = vmatprep.subr.mxu0 0.0
    %428 = vmatpush1.msra.mxu0 0.0
    %429 = vmatprep.subr.mxu0 0.0
    %430 = vmatpush1.msra.mxu0 0.0
    %431 = vmatprep.subr.mxu0 0.0
    %432 = vmatpush1.msra.mxu0 0.0
    %433 = vmatprep.subr.mxu0 0.0
    %434 = vmatpush1.msra.mxu0 0.0
    %435 = vmatprep.subr.mxu0 0.0
    %436 = vmatpush1.msra.mxu0 0.0
    %437 = vmatprep.subr.mxu0 0.0
    %438 = vmatpush1.msra.mxu0 0.0
    %439 = vmatprep.subr.mxu0 0.0
    %440 = vmatpush1.msra.mxu0 0.0
    %441 = vmatprep.subr.mxu0 0.0
    %442 = vmatpush1.msra.mxu0 0.0
    %443 = vmatprep.subr.mxu0 0.0
    %444 = vmatpush1.msra.mxu0 0.0
    %445 = vmatprep.subr.mxu0 0.0
    %446 = vmatpush1.msra.mxu0 0.0
    %447 = vmatprep.subr.mxu0 0.0
    %448 = vmatpush1.msra.mxu0 0.0
    %449 = vmatprep.mubr.f32.mxu0 0.0
    %450 = vmatmul.mubr.f32.gmra.mrb[0].mxu0 %v181
    %v451 = vpop.f32.mrb[0].mxu0
    %v452 = vadd.f32 %v295, %v451
    %v453 = vpop.f32.mrb[0].mxu0
    %v454 = vadd.f32 %v299, %v453
    %455 = vdwg.mxu0
    %456 = vmatprep.subr.mxu0 %v191
    %457 = vmatpush1.msra.mxu0 %v190
    %458 = vmatprep.subr.mxu0 %v197
    %459 = vmatpush1.msra.mxu0 %v196
    %460 = vmatprep.subr.mxu0 %v203
    %461 = vmatpush1.msra.mxu0 %v202
    %462 = vmatprep.subr.mxu0 %v209
    %463 = vmatpush1.msra.mxu0 %v208
    %464 = vmatprep.subr.mxu0 %v215
    %465 = vmatpush1.msra.mxu0 %v214
    %466 = vmatprep.subr.mxu0 %v221
    %467 = vmatpush1.msra.mxu0 %v220
    %468 = vmatprep.subr.mxu0 %v227
    %469 = vmatpush1.msra.mxu0 %v226
    %470 = vmatprep.subr.mxu0 %v233
    %471 = vmatpush1.msra.mxu0 %v232
    %472 = vmatprep.subr.mxu0 %v239
    %473 = vmatpush1.msra.mxu0 %v238
    %474 = vmatprep.subr.mxu0 %v245
    %475 = vmatpush1.msra.mxu0 %v244
    %476 = vmatprep.subr.mxu0 %v251
    %477 = vmatpush1.msra.mxu0 %v250
    %478 = vmatprep.subr.mxu0 %v257
    %479 = vmatpush1.msra.mxu0 %v256
    %480 = vmatprep.subr.mxu0 %v263
    %481 = vmatpush1.msra.mxu0 %v262
    %482 = vmatprep.subr.mxu0 %v269
    %483 = vmatpush1.msra.mxu0 %v268
    %484 = vmatprep.subr.mxu0 %v275
    %485 = vmatpush1.msra.mxu0 %v274
    %486 = vmatprep.subr.mxu0 %v281
    %487 = vmatpush1.msra.mxu0 %v280
    %488 = vmatprep.subr.mxu0 0.0
    %489 = vmatpush1.msra.mxu0 0.0
    %490 = vmatprep.subr.mxu0 0.0
    %491 = vmatpush1.msra.mxu0 0.0
    %492 = vmatprep.subr.mxu0 0.0
    %493 = vmatpush1.msra.mxu0 0.0
    %494 = vmatprep.subr.mxu0 0.0
    %495 = vmatpush1.msra.mxu0 0.0
    %496 = vmatprep.subr.mxu0 0.0
    %497 = vmatpush1.msra.mxu0 0.0
    %498 = vmatprep.subr.mxu0 0.0
    %499 = vmatpush1.msra.mxu0 0.0
    %500 = vmatprep.subr.mxu0 0.0
    %501 = vmatpush1.msra.mxu0 0.0
    %502 = vmatprep.subr.mxu0 0.0
    %503 = vmatpush1.msra.mxu0 0.0
    %504 = vmatprep.subr.mxu0 0.0
    %505 = vmatpush1.msra.mxu0 0.0
    %506 = vmatprep.subr.mxu0 0.0
    %507 = vmatpush1.msra.mxu0 0.0
    %508 = vmatprep.subr.mxu0 0.0
    %509 = vmatpush1.msra.mxu0 0.0
    %510 = vmatprep.subr.mxu0 0.0
    %511 = vmatpush1.msra.mxu0 0.0
    %512 = vmatprep.subr.mxu0 0.0
    %513 = vmatpush1.msra.mxu0 0.0
    %514 = vmatprep.subr.mxu0 0.0
    %515 = vmatpush1.msra.mxu0 0.0
    %516 = vmatprep.subr.mxu0 0.0
    %517 = vmatpush1.msra.mxu0 0.0
    %518 = vmatprep.subr.mxu0 0.0
    %519 = vmatpush1.msra.mxu0 0.0
    %520 = vmatprep.mubr.f32.mxu0 0.0
    %521 = vmatmul.mubr.f32.gmra.mrb[0].mxu0 %v181
    %v522 = vpop.f32.mrb[0].mxu0
    %v523 = vadd.f32 %v303, %v522
    %v524 = vpop.f32.mrb[0].mxu0
    %v525 = vadd.f32 %v307, %v524
    %526 = vdwg.mxu0
    %v527 = vld [vmem:[#allocation6] sm:$0xff]
    %v528 = vld [vmem:[#allocation6 + $0x8] sm:$0xff]
    %v529 = vld [vmem:[#allocation6 + $0x10] sm:$0xff]
    %v530 = vld [vmem:[#allocation6 + $0x18] sm:$0xff]
    %v531 = vld [vmem:[#allocation6 + $0x20] sm:$0xff]
    %v532 = vld [vmem:[#allocation6 + $0x28] sm:$0xff]
    %v533 = vld [vmem:[#allocation6 + $0x30] sm:$0xff]
    %v534 = vld [vmem:[#allocation6 + $0x38] sm:$0xff]
    %v535 = vld [vmem:[#allocation6 + $0x40] sm:$0xff]
    %v536 = vld [vmem:[#allocation6 + $0x48] sm:$0xff]
    %v537 = vld [vmem:[#allocation6 + $0x50] sm:$0xff]
    %v538 = vld [vmem:[#allocation6 + $0x58] sm:$0xff]
    %v539 = vld [vmem:[#allocation6 + $0x60] sm:$0xff]
    %v540 = vld [vmem:[#allocation6 + $0x68] sm:$0xff]
    %v541 = vld [vmem:[#allocation6 + $0x70] sm:$0xff]
    %v542 = vld [vmem:[#allocation6 + $0x78] sm:$0xff]
    %v543 = vld [vmem:[#allocation6 + $0x80] sm:$0xff]
    %v544 = vld [vmem:[#allocation6 + $0x88] sm:$0xff]
    %v545 = vld [vmem:[#allocation6 + $0x90] sm:$0xff]
    %v546 = vld [vmem:[#allocation6 + $0x98] sm:$0xff]
    %v547 = vld [vmem:[#allocation6 + $0xa0] sm:$0xff]
    %v548 = vld [vmem:[#allocation6 + $0xa8] sm:$0xff]
    %v549 = vld [vmem:[#allocation6 + $0xb0] sm:$0xff]
    %v550 = vld [vmem:[#allocation6 + $0xb8] sm:$0xff]
    %v551 = vld [vmem:[#allocation6 + $0xc0] sm:$0xff]
    %v552 = vld [vmem:[#allocation6 + $0xc8] sm:$0xff]
    %v553 = vld [vmem:[#allocation6 + $0xd0] sm:$0xff]
    %v554 = vld [vmem:[#allocation6 + $0xd8] sm:$0xff]
    %v555 = vld [vmem:[#allocation6 + $0xe0] sm:$0xff]
    %v556 = vld [vmem:[#allocation6 + $0xe8] sm:$0xff]
    %v557 = vld [vmem:[#allocation6 + $0xf0] sm:$0xff]
    %v558 = vld [vmem:[#allocation6 + $0xf8] sm:$0xff]
    %v559 = vld [vmem:[#allocation6 + $0x100] sm:$0xff]
    %v560 = vld [vmem:[#allocation6 + $0x108] sm:$0xff]
    %v561 = vld [vmem:[#allocation6 + $0x110] sm:$0xff]
    %v562 = vld [vmem:[#allocation6 + $0x118] sm:$0xff]
    %v563 = vld [vmem:[#allocation6 + $0x120] sm:$0xff]
    %v564 = vld [vmem:[#allocation6 + $0x128] sm:$0xff]
    %v565 = vld [vmem:[#allocation6 + $0x130] sm:$0xff]
    %v566 = vld [vmem:[#allocation6 + $0x138] sm:$0xff]
    %v567 = vld [vmem:[#allocation6 + $0x140] sm:$0xff]
    %v568 = vld [vmem:[#allocation6 + $0x148] sm:$0xff]
    %v569 = vld [vmem:[#allocation6 + $0x150] sm:$0xff]
    %v570 = vld [vmem:[#allocation6 + $0x158] sm:$0xff]
    %v571 = vld [vmem:[#allocation6 + $0x160] sm:$0xff]
    %v572 = vld [vmem:[#allocation6 + $0x168] sm:$0xff]
    %v573 = vld [vmem:[#allocation6 + $0x170] sm:$0xff]
    %v574 = vld [vmem:[#allocation6 + $0x178] sm:$0xff]
    %v575 = vld [vmem:[#allocation6 + $0x180] sm:$0xff]
    %v576 = vld [vmem:[#allocation6 + $0x188] sm:$0xff]
    %v577 = vld [vmem:[#allocation6 + $0x190] sm:$0xff]
    %v578 = vld [vmem:[#allocation6 + $0x198] sm:$0xff]
    %v579 = vld [vmem:[#allocation6 + $0x1a0] sm:$0xff]
    %v580 = vld [vmem:[#allocation6 + $0x1a8] sm:$0xff]
    %v581 = vld [vmem:[#allocation6 + $0x1b0] sm:$0xff]
    %v582 = vld [vmem:[#allocation6 + $0x1b8] sm:$0xff]
    %v583 = vld [vmem:[#allocation6 + $0x1c0] sm:$0xff]
    %v584 = vld [vmem:[#allocation6 + $0x1c8] sm:$0xff]
    %v585 = vld [vmem:[#allocation6 + $0x1d0] sm:$0xff]
    %v586 = vld [vmem:[#allocation6 + $0x1d8] sm:$0xff]
    %v587 = vld [vmem:[#allocation6 + $0x1e0] sm:$0xff]
    %v588 = vld [vmem:[#allocation6 + $0x1e8] sm:$0xff]
    %v589 = vld [vmem:[#allocation6 + $0x1f0] sm:$0xff]
    %v590 = vld [vmem:[#allocation6 + $0x1f8] sm:$0xff]
    %v591 = vld [vmem:[#allocation6 + $0x200] sm:$0xff]
    %v592 = vld [vmem:[#allocation6 + $0x208] sm:$0xff]
    %v593 = vld [vmem:[#allocation6 + $0x210] sm:$0xff]
    %v594 = vld [vmem:[#allocation6 + $0x218] sm:$0xff]
    %v595 = vld [vmem:[#allocation6 + $0x220] sm:$0xff]
    %v596 = vld [vmem:[#allocation6 + $0x228] sm:$0xff]
    %v597 = vld [vmem:[#allocation6 + $0x230] sm:$0xff]
    %v598 = vld [vmem:[#allocation6 + $0x238] sm:$0xff]
    %v599 = vld [vmem:[#allocation6 + $0x240] sm:$0xff]
    %v600 = vld [vmem:[#allocation6 + $0x248] sm:$0xff]
    %v601 = vld [vmem:[#allocation6 + $0x250] sm:$0xff]
    %v602 = vld [vmem:[#allocation6 + $0x258] sm:$0xff]
    %v603 = vld [vmem:[#allocation6 + $0x260] sm:$0xff]
    %v604 = vld [vmem:[#allocation6 + $0x268] sm:$0xff]
    %v605 = vld [vmem:[#allocation6 + $0x270] sm:$0xff]
    %v606 = vld [vmem:[#allocation6 + $0x278] sm:$0xff]
    %v607 = vld [vmem:[#allocation6 + $0x280] sm:$0xff]
    %v608 = vld [vmem:[#allocation6 + $0x288] sm:$0xff]
    %v609 = vld [vmem:[#allocation6 + $0x290] sm:$0xff]
    %v610 = vld [vmem:[#allocation6 + $0x298] sm:$0xff]
    %v611 = vld [vmem:[#allocation6 + $0x2a0] sm:$0xff]
    %v612 = vld [vmem:[#allocation6 + $0x2a8] sm:$0xff]
    %v613 = vld [vmem:[#allocation6 + $0x2b0] sm:$0xff]
    %v614 = vld [vmem:[#allocation6 + $0x2b8] sm:$0xff]
    %v615 = vld [vmem:[#allocation6 + $0x2c0] sm:$0xff]
    %v616 = vld [vmem:[#allocation6 + $0x2c8] sm:$0xff]
    %v617 = vld [vmem:[#allocation6 + $0x2d0] sm:$0xff]
    %v618 = vld [vmem:[#allocation6 + $0x2d8] sm:$0xff]
    %v619 = vld [vmem:[#allocation6 + $0x2e0] sm:$0xff]
    %v620 = vld [vmem:[#allocation6 + $0x2e8] sm:$0xff]
    %v621 = vld [vmem:[#allocation6 + $0x2f0] sm:$0xff]
    %v622 = vld [vmem:[#allocation6 + $0x2f8] sm:$0xff]
    %v623 = vld [vmem:[#allocation6 + $0x300] sm:$0xff]
    %v624 = vld [vmem:[#allocation6 + $0x308] sm:$0xff]
    %v625 = vld [vmem:[#allocation6 + $0x310] sm:$0xff]
    %v626 = vld [vmem:[#allocation6 + $0x318] sm:$0xff]
    %v627 = vld [vmem:[#allocation6 + $0x320] sm:$0xff]
    %v628 = vld [vmem:[#allocation6 + $0x328] sm:$0xff]
    %v629 = vld [vmem:[#allocation6 + $0x330] sm:$0xff]
    %v630 = vld [vmem:[#allocation6 + $0x338] sm:$0xff]
    %v631 = vld [vmem:[#allocation6 + $0x340] sm:$0xff]
    %v632 = vld [vmem:[#allocation6 + $0x348] sm:$0xff]
    %v633 = vld [vmem:[#allocation6 + $0x350] sm:$0xff]
    %v634 = vld [vmem:[#allocation6 + $0x358] sm:$0xff]
    %v635 = vld [vmem:[#allocation6 + $0x360] sm:$0xff]
    %v636 = vld [vmem:[#allocation6 + $0x368] sm:$0xff]
    %v637 = vld [vmem:[#allocation6 + $0x370] sm:$0xff]
    %v638 = vld [vmem:[#allocation6 + $0x378] sm:$0xff]
    %v639 = vld [vmem:[#allocation6 + $0x380] sm:$0xff]
    %v640 = vld [vmem:[#allocation6 + $0x388] sm:$0xff]
    %v641 = vld [vmem:[#allocation6 + $0x390] sm:$0xff]
    %v642 = vld [vmem:[#allocation6 + $0x398] sm:$0xff]
    %v643 = vld [vmem:[#allocation6 + $0x3a0] sm:$0xff]
    %v644 = vld [vmem:[#allocation6 + $0x3a8] sm:$0xff]
    %v645 = vld [vmem:[#allocation6 + $0x3b0] sm:$0xff]
    %v646 = vld [vmem:[#allocation6 + $0x3b8] sm:$0xff]
    %v647 = vld [vmem:[#allocation6 + $0x3c0] sm:$0xff]
    %v648 = vld [vmem:[#allocation6 + $0x3c8] sm:$0xff]
    %v649 = vld [vmem:[#allocation6 + $0x3d0] sm:$0xff]
    %v650 = vld [vmem:[#allocation6 + $0x3d8] sm:$0xff]
    %v651 = vld [vmem:[#allocation6 + $0x3e0] sm:$0xff]
    %v652 = vld [vmem:[#allocation6 + $0x3e8] sm:$0xff]
    %v653 = vld [vmem:[#allocation6 + $0x3f0] sm:$0xff]
    %v654 = vld [vmem:[#allocation6 + $0x3f8] sm:$0xff]
    %v655 = vld [vmem:[#allocation6 + $0x400] sm:$0xff]
    %v656 = vld [vmem:[#allocation6 + $0x408] sm:$0xff]
    %v657 = vld [vmem:[#allocation6 + $0x410] sm:$0xff]
    %v658 = vld [vmem:[#allocation6 + $0x418] sm:$0xff]
    %v659 = vld [vmem:[#allocation6 + $0x420] sm:$0xff]
    %v660 = vld [vmem:[#allocation6 + $0x428] sm:$0xff]
    %v661 = vld [vmem:[#allocation6 + $0x430] sm:$0xff]
    %v662 = vld [vmem:[#allocation6 + $0x438] sm:$0xff]
    %v663 = vld [vmem:[#allocation6 + $0x440] sm:$0xff]
    %v664 = vld [vmem:[#allocation6 + $0x448] sm:$0xff]
    %v665 = vld [vmem:[#allocation6 + $0x450] sm:$0xff]
    %v666 = vld [vmem:[#allocation6 + $0x458] sm:$0xff]
    %v667 = vld [vmem:[#allocation6 + $0x460] sm:$0xff]
    %v668 = vld [vmem:[#allocation6 + $0x468] sm:$0xff]
    %v669 = vld [vmem:[#allocation6 + $0x470] sm:$0xff]
    %v670 = vld [vmem:[#allocation6 + $0x478] sm:$0xff]
    %v671 = vld [vmem:[#allocation6 + $0x480] sm:$0xff]
    %v672 = vld [vmem:[#allocation6 + $0x488] sm:$0xff]
    %v673 = vld [vmem:[#allocation6 + $0x490] sm:$0xff]
    %v674 = vld [vmem:[#allocation6 + $0x498] sm:$0xff]
    %v675 = vld [vmem:[#allocation6 + $0x4a0] sm:$0xff]
    %v676 = vld [vmem:[#allocation6 + $0x4a8] sm:$0xff]
    %v677 = vld [vmem:[#allocation6 + $0x4b0] sm:$0xff]
    %v678 = vld [vmem:[#allocation6 + $0x4b8] sm:$0xff]
    %v679 = vld [vmem:[#allocation6 + $0x4c0] sm:$0xff]
    %v680 = vld [vmem:[#allocation6 + $0x4c8] sm:$0xff]
    %v681 = vld [vmem:[#allocation6 + $0x4d0] sm:$0xff]
    %v682 = vld [vmem:[#allocation6 + $0x4d8] sm:$0xff]
    %v683 = vld [vmem:[#allocation6 + $0x4e0] sm:$0xff]
    %v684 = vld [vmem:[#allocation6 + $0x4e8] sm:$0xff]
    %v685 = vld [vmem:[#allocation6 + $0x4f0] sm:$0xff]
    %v686 = vld [vmem:[#allocation6 + $0x4f8] sm:$0xff]
    %v687 = vld [vmem:[#allocation6 + $0x500] sm:$0xff]
    %v688 = vld [vmem:[#allocation6 + $0x508] sm:$0xff]
    %v689 = vld [vmem:[#allocation6 + $0x510] sm:$0xff]
    %v690 = vld [vmem:[#allocation6 + $0x518] sm:$0xff]
    %v691 = vld [vmem:[#allocation6 + $0x520] sm:$0xff]
    %v692 = vld [vmem:[#allocation6 + $0x528] sm:$0xff]
    %v693 = vld [vmem:[#allocation6 + $0x530] sm:$0xff]
    %v694 = vld [vmem:[#allocation6 + $0x538] sm:$0xff]
    %v695 = vld [vmem:[#allocation6 + $0x540] sm:$0xff]
    %v696 = vld [vmem:[#allocation6 + $0x548] sm:$0xff]
    %v697 = vld [vmem:[#allocation6 + $0x550] sm:$0xff]
    %v698 = vld [vmem:[#allocation6 + $0x558] sm:$0xff]
    %v699 = vld [vmem:[#allocation6 + $0x560] sm:$0xff]
    %v700 = vld [vmem:[#allocation6 + $0x568] sm:$0xff]
    %v701 = vld [vmem:[#allocation6 + $0x570] sm:$0xff]
    %v702 = vld [vmem:[#allocation6 + $0x578] sm:$0xff]
    %v703 = vld [vmem:[#allocation6 + $0x580] sm:$0xff]
    %v704 = vld [vmem:[#allocation6 + $0x588] sm:$0xff]
    %v705 = vld [vmem:[#allocation6 + $0x590] sm:$0xff]
    %v706 = vld [vmem:[#allocation6 + $0x598] sm:$0xff]
    %v707 = vld [vmem:[#allocation6 + $0x5a0] sm:$0xff]
    %v708 = vld [vmem:[#allocation6 + $0x5a8] sm:$0xff]
    %v709 = vld [vmem:[#allocation6 + $0x5b0] sm:$0xff]
    %v710 = vld [vmem:[#allocation6 + $0x5b8] sm:$0xff]
    %v711 = vld [vmem:[#allocation6 + $0x5c0] sm:$0xff]
    %v712 = vld [vmem:[#allocation6 + $0x5c8] sm:$0xff]
    %v713 = vld [vmem:[#allocation6 + $0x5d0] sm:$0xff]
    %v714 = vld [vmem:[#allocation6 + $0x5d8] sm:$0xff]
    %v715 = vld [vmem:[#allocation6 + $0x5e0] sm:$0xff]
    %v716 = vld [vmem:[#allocation6 + $0x5e8] sm:$0xff]
    %v717 = vld [vmem:[#allocation6 + $0x5f0] sm:$0xff]
    %v718 = vld [vmem:[#allocation6 + $0x5f8] sm:$0xff]
    %719 = vmatprep.subr.mxu0 %v528
    %720 = vmatpush1.msra.mxu0 %v527
    %721 = vmatprep.subr.mxu0 %v534
    %722 = vmatpush1.msra.mxu0 %v533
    %723 = vmatprep.subr.mxu0 %v540
    %724 = vmatpush1.msra.mxu0 %v539
    %725 = vmatprep.subr.mxu0 %v546
    %726 = vmatpush1.msra.mxu0 %v545
    %727 = vmatprep.subr.mxu0 %v552
    %728 = vmatpush1.msra.mxu0 %v551
    %729 = vmatprep.subr.mxu0 %v558
    %730 = vmatpush1.msra.mxu0 %v557
    %731 = vmatprep.subr.mxu0 %v564
    %732 = vmatpush1.msra.mxu0 %v563
    %733 = vmatprep.subr.mxu0 %v570
    %734 = vmatpush1.msra.mxu0 %v569
    %735 = vmatprep.subr.mxu0 %v576
    %736 = vmatpush1.msra.mxu0 %v575
    %737 = vmatprep.subr.mxu0 %v582
    %738 = vmatpush1.msra.mxu0 %v581
    %739 = vmatprep.subr.mxu0 %v588
    %740 = vmatpush1.msra.mxu0 %v587
    %741 = vmatprep.subr.mxu0 %v594
    %742 = vmatpush1.msra.mxu0 %v593
    %743 = vmatprep.subr.mxu0 %v600
    %744 = vmatpush1.msra.mxu0 %v599
    %745 = vmatprep.subr.mxu0 %v606
    %746 = vmatpush1.msra.mxu0 %v605
    %747 = vmatprep.subr.mxu0 %v612
    %748 = vmatpush1.msra.mxu0 %v611
    %749 = vmatprep.subr.mxu0 %v618
    %750 = vmatpush1.msra.mxu0 %v617
    %751 = vmatprep.subr.mxu0 %v624
    %752 = vmatpush1.msra.mxu0 %v623
    %753 = vmatprep.subr.mxu0 %v630
    %754 = vmatpush1.msra.mxu0 %v629
    %755 = vmatprep.subr.mxu0 %v636
    %756 = vmatpush1.msra.mxu0 %v635
    %757 = vmatprep.subr.mxu0 %v642
    %758 = vmatpush1.msra.mxu0 %v641
    %759 = vmatprep.subr.mxu0 %v648
    %760 = vmatpush1.msra.mxu0 %v647
    %761 = vmatprep.subr.mxu0 %v654
    %762 = vmatpush1.msra.mxu0 %v653
    %763 = vmatprep.subr.mxu0 %v660
    %764 = vmatpush1.msra.mxu0 %v659
    %765 = vmatprep.subr.mxu0 %v666
    %766 = vmatpush1.msra.mxu0 %v665
    %767 = vmatprep.subr.mxu0 %v672
    %768 = vmatpush1.msra.mxu0 %v671
    %769 = vmatprep.subr.mxu0 %v678
    %770 = vmatpush1.msra.mxu0 %v677
    %771 = vmatprep.subr.mxu0 %v684
    %772 = vmatpush1.msra.mxu0 %v683
    %773 = vmatprep.subr.mxu0 %v690
    %774 = vmatpush1.msra.mxu0 %v689
    %775 = vmatprep.subr.mxu0 %v696
    %776 = vmatpush1.msra.mxu0 %v695
    %777 = vmatprep.subr.mxu0 %v702
    %778 = vmatpush1.msra.mxu0 %v701
    %779 = vmatprep.subr.mxu0 %v708
    %780 = vmatpush1.msra.mxu0 %v707
    %781 = vmatprep.subr.mxu0 %v714
    %782 = vmatpush1.msra.mxu0 %v713
    %783 = vmatprep.mubr.f32.mxu0 %v185
    %784 = vmatmul.mubr.f32.gmra.mrb[0].mxu0 %v184
    %v785 = vpop.f32.mrb[0].mxu0
    %v786 = vadd.f32 0.0, %v785
    %v787 = vpop.f32.mrb[0].mxu0
    %v788 = vadd.f32 0.0, %v787
    %789 = vdwg.mxu0
    %790 = vmatprep.subr.mxu0 %v530
    %791 = vmatpush1.msra.mxu0 %v529
    %792 = vmatprep.subr.mxu0 %v536
    %793 = vmatpush1.msra.mxu0 %v535
    %794 = vmatprep.subr.mxu0 %v542
    %795 = vmatpush1.msra.mxu0 %v541
    %796 = vmatprep.subr.mxu0 %v548
    %797 = vmatpush1.msra.mxu0 %v547
    %798 = vmatprep.subr.mxu0 %v554
    %799 = vmatpush1.msra.mxu0 %v553
    %800 = vmatprep.subr.mxu0 %v560
    %801 = vmatpush1.msra.mxu0 %v559
    %802 = vmatprep.subr.mxu0 %v566
    %803 = vmatpush1.msra.mxu0 %v565
    %804 = vmatprep.subr.mxu0 %v572
    %805 = vmatpush1.msra.mxu0 %v571
    %806 = vmatprep.subr.mxu0 %v578
    %807 = vmatpush1.msra.mxu0 %v577
    %808 = vmatprep.subr.mxu0 %v584
    %809 = vmatpush1.msra.mxu0 %v583
    %810 = vmatprep.subr.mxu0 %v590
    %811 = vmatpush1.msra.mxu0 %v589
    %812 = vmatprep.subr.mxu0 %v596
    %813 = vmatpush1.msra.mxu0 %v595
    %814 = vmatprep.subr.mxu0 %v602
    %815 = vmatpush1.msra.mxu0 %v601
    %816 = vmatprep.subr.mxu0 %v608
    %817 = vmatpush1.msra.mxu0 %v607
    %818 = vmatprep.subr.mxu0 %v614
    %819 = vmatpush1.msra.mxu0 %v613
    %820 = vmatprep.subr.mxu0 %v620
    %821 = vmatpush1.msra.mxu0 %v619
    %822 = vmatprep.subr.mxu0 %v626
    %823 = vmatpush1.msra.mxu0 %v625
    %824 = vmatprep.subr.mxu0 %v632
    %825 = vmatpush1.msra.mxu0 %v631
    %826 = vmatprep.subr.mxu0 %v638
    %827 = vmatpush1.msra.mxu0 %v637
    %828 = vmatprep.subr.mxu0 %v644
    %829 = vmatpush1.msra.mxu0 %v643
    %830 = vmatprep.subr.mxu0 %v650
    %831 = vmatpush1.msra.mxu0 %v649
    %832 = vmatprep.subr.mxu0 %v656
    %833 = vmatpush1.msra.mxu0 %v655
    %834 = vmatprep.subr.mxu0 %v662
    %835 = vmatpush1.msra.mxu0 %v661
    %836 = vmatprep.subr.mxu0 %v668
    %837 = vmatpush1.msra.mxu0 %v667
    %838 = vmatprep.subr.mxu0 %v674
    %839 = vmatpush1.msra.mxu0 %v673
    %840 = vmatprep.subr.mxu0 %v680
    %841 = vmatpush1.msra.mxu0 %v679
    %842 = vmatprep.subr.mxu0 %v686
    %843 = vmatpush1.msra.mxu0 %v685
    %844 = vmatprep.subr.mxu0 %v692
    %845 = vmatpush1.msra.mxu0 %v691
    %846 = vmatprep.subr.mxu0 %v698
    %847 = vmatpush1.msra.mxu0 %v697
    %848 = vmatprep.subr.mxu0 %v704
    %849 = vmatpush1.msra.mxu0 %v703
    %850 = vmatprep.subr.mxu0 %v710
    %851 = vmatpush1.msra.mxu0 %v709
    %852 = vmatprep.subr.mxu0 %v716
    %853 = vmatpush1.msra.mxu0 %v715
    %854 = vmatprep.mubr.f32.mxu0 %v185
    %855 = vmatmul.mubr.f32.gmra.mrb[0].mxu0 %v184
    %v856 = vpop.f32.mrb[0].mxu0
    %v857 = vadd.f32 0.0, %v856
    %v858 = vpop.f32.mrb[0].mxu0
    %v859 = vadd.f32 0.0, %v858
    %860 = vdwg.mxu0
    %861 = vmatprep.subr.mxu0 %v532
    %862 = vmatpush1.msra.mxu0 %v531
    %863 = vmatprep.subr.mxu0 %v538
    %864 = vmatpush1.msra.mxu0 %v537
    %865 = vmatprep.subr.mxu0 %v544
    %866 = vmatpush1.msra.mxu0 %v543
    %867 = vmatprep.subr.mxu0 %v550
    %868 = vmatpush1.msra.mxu0 %v549
    %869 = vmatprep.subr.mxu0 %v556
    %870 = vmatpush1.msra.mxu0 %v555
    %871 = vmatprep.subr.mxu0 %v562
    %872 = vmatpush1.msra.mxu0 %v561
    %873 = vmatprep.subr.mxu0 %v568
    %874 = vmatpush1.msra.mxu0 %v567
    %875 = vmatprep.subr.mxu0 %v574
    %876 = vmatpush1.msra.mxu0 %v573
    %877 = vmatprep.subr.mxu0 %v580
    %878 = vmatpush1.msra.mxu0 %v579
    %879 = vmatprep.subr.mxu0 %v586
    %880 = vmatpush1.msra.mxu0 %v585
    %881 = vmatprep.subr.mxu0 %v592
    %882 = vmatpush1.msra.mxu0 %v591
    %883 = vmatprep.subr.mxu0 %v598
    %884 = vmatpush1.msra.mxu0 %v597
    %885 = vmatprep.subr.mxu0 %v604
    %886 = vmatpush1.msra.mxu0 %v603
    %887 = vmatprep.subr.mxu0 %v610
    %888 = vmatpush1.msra.mxu0 %v609
    %889 = vmatprep.subr.mxu0 %v616
    %890 = vmatpush1.msra.mxu0 %v615
    %891 = vmatprep.subr.mxu0 %v622
    %892 = vmatpush1.msra.mxu0 %v621
    %893 = vmatprep.subr.mxu0 %v628
    %894 = vmatpush1.msra.mxu0 %v627
    %895 = vmatprep.subr.mxu0 %v634
    %896 = vmatpush1.msra.mxu0 %v633
    %897 = vmatprep.subr.mxu0 %v640
    %898 = vmatpush1.msra.mxu0 %v639
    %899 = vmatprep.subr.mxu0 %v646
    %900 = vmatpush1.msra.mxu0 %v645
    %901 = vmatprep.subr.mxu0 %v652
    %902 = vmatpush1.msra.mxu0 %v651
    %903 = vmatprep.subr.mxu0 %v658
    %904 = vmatpush1.msra.mxu0 %v657
    %905 = vmatprep.subr.mxu0 %v664
    %906 = vmatpush1.msra.mxu0 %v663
    %907 = vmatprep.subr.mxu0 %v670
    %908 = vmatpush1.msra.mxu0 %v669
    %909 = vmatprep.subr.mxu0 %v676
    %910 = vmatpush1.msra.mxu0 %v675
    %911 = vmatprep.subr.mxu0 %v682
    %912 = vmatpush1.msra.mxu0 %v681
    %913 = vmatprep.subr.mxu0 %v688
    %914 = vmatpush1.msra.mxu0 %v687
    %915 = vmatprep.subr.mxu0 %v694
    %916 = vmatpush1.msra.mxu0 %v693
    %917 = vmatprep.subr.mxu0 %v700
    %918 = vmatpush1.msra.mxu0 %v699
    %919 = vmatprep.subr.mxu0 %v706
    %920 = vmatpush1.msra.mxu0 %v705
    %921 = vmatprep.subr.mxu0 %v712
    %922 = vmatpush1.msra.mxu0 %v711
    %923 = vmatprep.subr.mxu0 %v718
    %924 = vmatpush1.msra.mxu0 %v717
    %925 = vmatprep.mubr.f32.mxu0 %v185
    %926 = vmatmul.mubr.f32.gmra.mrb[0].mxu0 %v184
    %v927 = vpop.f32.mrb[0].mxu0
    %v928 = vadd.f32 0.0, %v927
    %v929 = vpop.f32.mrb[0].mxu0
    %v930 = vadd.f32 0.0, %v929
    %931 = vdwg.mxu0
    %v932 = vadd.f32 %v381, %v786
    %v933 = vadd.f32 %v383, %v788
    %v934 = vxor.u32 %v932, 2147483648
    %v935 = vxor.u32 %v933, 2147483648
    %v936 = vmul.f32 %v934, 1.442695
    %v937 = vpow.pop %v936
    %v938 = vmul.f32 %v935, 1.442695
    %v939 = vpow.pop %v938
    %v940 = vadd.f32 %v937, 1.0
    %v941 = vadd.f32 %v939, 1.0
    %v942 = vrcp.pop %v940
    %v943 = vmul.f32 1.0, %v942
    %v944 = vrcp.pop %v941
    %v945 = vmul.f32 1.0, %v944
    %v946 = vadd.f32 %v452, %v857
    %v947 = vadd.f32 %v454, %v859
    %v948 = vxor.u32 %v946, 2147483648
    %v949 = vxor.u32 %v947, 2147483648
    %v950 = vmul.f32 %v948, 1.442695
    %v951 = vpow.pop %v950
    %v952 = vmul.f32 %v949, 1.442695
    %v953 = vpow.pop %v952
    %v954 = vadd.f32 %v951, 1.0
    %v955 = vadd.f32 %v953, 1.0
    %v956 = vrcp.pop %v954
    %v957 = vmul.f32 1.0, %v956
    %v958 = vrcp.pop %v955
    %v959 = vmul.f32 1.0, %v958
    %v960 = vld [vmem:[%s6] sm:$0x3]
    %v962 = vlaneseq
    %v963 = vshrl.u32 %v962, 7
    %v964 = vsub.s32 0, %v963
    %v965 = vrot.slane %v960, %v964
    %v966 = vlaneseq
    %v967 = vshrl.u32 %v966, 7
    %v968 = vsub.s32 1, %v967
    %v969 = vrot.slane %v960, %v968
    %v972 = vadd.f32 %v928, %v965
    %v973 = vadd.f32 %v930, %v969
    %v974 = vmul.f32 %v943, %v972
    %v975 = vmul.f32 %v945, %v973
    %v976 = vadd.f32 %v523, %v974
    %v977 = vadd.f32 %v525, %v975
    %v978 = vtanh.pop %v976
    %v979 = vtanh.pop %v977
    %v980 = vsub.f32 1.0, %v957
    %v981 = vsub.f32 1.0, %v959
    %v982 = vmul.f32 %v980, %v978
    %v983 = vmul.f32 %v981, %v979
    %v984 = vmul.f32 %v957, %v184
    %v985 = vmul.f32 %v959, %v185
    %v986 = vadd.f32 %v982, %v984
    %v987 = vadd.f32 %v983, %v985
    %988 = vst [vmem:[%s10] sm:$0xff] %v986
    %989 = vst [vmem:[%s10 + $0x8] sm:$0xff] %v987
    %v990 = vld [vmem:[#allocation7] sm:$0xff]
    %v991 = vld [vmem:[#allocation7 + $0x8] sm:$0xff]
    %v992 = vld [vmem:[#allocation7 + $0x10] sm:$0xff]
    %v993 = vld [vmem:[#allocation7 + $0x18] sm:$0xff]
    %v994 = vld [vmem:[#allocation7 + $0x20] sm:$0xff]
    %v995 = vld [vmem:[#allocation7 + $0x28] sm:$0xff]
    %v996 = vld [vmem:[#allocation7 + $0x30] sm:$0xff]
    %v997 = vld [vmem:[#allocation7 + $0x38] sm:$0xff]
    %v998 = vld [vmem:[#allocation7 + $0x40] sm:$0xff]
    %v999 = vld [vmem:[#allocation7 + $0x48] sm:$0xff]
    %v1000 = vld [vmem:[#allocation7 + $0x50] sm:$0xff]
    %v1001 = vld [vmem:[#allocation7 + $0x58] sm:$0xff]
    %v1002 = vld [vmem:[#allocation7 + $0x60] sm:$0xff]
    %v1003 = vld [vmem:[#allocation7 + $0x68] sm:$0xff]
    %v1004 = vld [vmem:[#allocation7 + $0x70] sm:$0xff]
    %v1005 = vld [vmem:[#allocation7 + $0x78] sm:$0xff]
    %v1006 = vld [vmem:[#allocation7 + $0x80] sm:$0xff]
    %v1007 = vld [vmem:[#allocation7 + $0x88] sm:$0xff]
    %v1008 = vld [vmem:[#allocation7 + $0x90] sm:$0xff]
    %v1009 = vld [vmem:[#allocation7 + $0x98] sm:$0xff]
    %v1010 = vld [vmem:[#allocation7 + $0xa0] sm:$0xff]
    %v1011 = vld [vmem:[#allocation7 + $0xa8] sm:$0xff]
    %v1012 = vld [vmem:[#allocation7 + $0xb0] sm:$0xff]
    %v1013 = vld [vmem:[#allocation7 + $0xb8] sm:$0xff]
    %v1014 = vld [vmem:[#allocation7 + $0xc0] sm:$0xff]
    %v1015 = vld [vmem:[#allocation7 + $0xc8] sm:$0xff]
    %v1016 = vld [vmem:[#allocation7 + $0xd0] sm:$0xff]
    %v1017 = vld [vmem:[#allocation7 + $0xd8] sm:$0xff]
    %v1018 = vld [vmem:[#allocation7 + $0xe0] sm:$0xff]
    %v1019 = vld [vmem:[#allocation7 + $0xe8] sm:$0xff]
    %v1020 = vld [vmem:[#allocation7 + $0xf0] sm:$0xff]
    %v1021 = vld [vmem:[#allocation7 + $0xf8] sm:$0xff]
    %v1022 = vld [vmem:[%s8] sm:$0x1]
    %v1024 = vlaneseq
    %v1025 = vshrl.u32 %v1024, 7
    %v1026 = vsub.s32 0, %v1025
    %v1027 = vrot.slane %v1022, %v1026
    %1029 = vmatprep.subr.mxu0 0.0
    %1030 = vmatpush1.msra.mxu0 %v990
    %1031 = vmatprep.subr.mxu0 0.0
    %1032 = vmatpush1.msra.mxu0 %v991
    %1033 = vmatprep.subr.mxu0 0.0
    %1034 = vmatpush1.msra.mxu0 %v992
    %1035 = vmatprep.subr.mxu0 0.0
    %1036 = vmatpush1.msra.mxu0 %v993
    %1037 = vmatprep.subr.mxu0 0.0
    %1038 = vmatpush1.msra.mxu0 %v994
    %1039 = vmatprep.subr.mxu0 0.0
    %1040 = vmatpush1.msra.mxu0 %v995
    %1041 = vmatprep.subr.mxu0 0.0
    %1042 = vmatpush1.msra.mxu0 %v996
    %1043 = vmatprep.subr.mxu0 0.0
    %1044 = vmatpush1.msra.mxu0 %v997
    %1045 = vmatprep.subr.mxu0 0.0
    %1046 = vmatpush1.msra.mxu0 %v998
    %1047 = vmatprep.subr.mxu0 0.0
    %1048 = vmatpush1.msra.mxu0 %v999
    %1049 = vmatprep.subr.mxu0 0.0
    %1050 = vmatpush1.msra.mxu0 %v1000
    %1051 = vmatprep.subr.mxu0 0.0
    %1052 = vmatpush1.msra.mxu0 %v1001
    %1053 = vmatprep.subr.mxu0 0.0
    %1054 = vmatpush1.msra.mxu0 %v1002
    %1055 = vmatprep.subr.mxu0 0.0
    %1056 = vmatpush1.msra.mxu0 %v1003
    %1057 = vmatprep.subr.mxu0 0.0
    %1058 = vmatpush1.msra.mxu0 %v1004
    %1059 = vmatprep.subr.mxu0 0.0
    %1060 = vmatpush1.msra.mxu0 %v1005
    %1061 = vmatprep.subr.mxu0 0.0
    %1062 = vmatpush1.msra.mxu0 %v1006
    %1063 = vmatprep.subr.mxu0 0.0
    %1064 = vmatpush1.msra.mxu0 %v1007
    %1065 = vmatprep.subr.mxu0 0.0
    %1066 = vmatpush1.msra.mxu0 %v1008
    %1067 = vmatprep.subr.mxu0 0.0
    %1068 = vmatpush1.msra.mxu0 %v1009
    %1069 = vmatprep.subr.mxu0 0.0
    %1070 = vmatpush1.msra.mxu0 %v1010
    %1071 = vmatprep.subr.mxu0 0.0
    %1072 = vmatpush1.msra.mxu0 %v1011
    %1073 = vmatprep.subr.mxu0 0.0
    %1074 = vmatpush1.msra.mxu0 %v1012
    %1075 = vmatprep.subr.mxu0 0.0
    %1076 = vmatpush1.msra.mxu0 %v1013
    %1077 = vmatprep.subr.mxu0 0.0
    %1078 = vmatpush1.msra.mxu0 %v1014
    %1079 = vmatprep.subr.mxu0 0.0
    %1080 = vmatpush1.msra.mxu0 %v1015
    %1081 = vmatprep.subr.mxu0 0.0
    %1082 = vmatpush1.msra.mxu0 %v1016
    %1083 = vmatprep.subr.mxu0 0.0
    %1084 = vmatpush1.msra.mxu0 %v1017
    %1085 = vmatprep.subr.mxu0 0.0
    %1086 = vmatpush1.msra.mxu0 %v1018
    %1087 = vmatprep.subr.mxu0 0.0
    %1088 = vmatpush1.msra.mxu0 %v1019
    %1089 = vmatprep.subr.mxu0 0.0
    %1090 = vmatpush1.msra.mxu0 %v1020
    %1091 = vmatprep.subr.mxu0 0.0
    %1092 = vmatpush1.msra.mxu0 %v1021
    %1093 = vmatprep.mubr.f32.mxu0 %v987
    %1094 = vmatmul.mubr.f32.gmra.mrb[0].mxu0 %v986
    %v1095 = vpop.f32.mrb[0].mxu0
    %v1096 = vadd.f32 %v1027, %v1095
    %v1097 = vpop.f32.mrb[0].mxu0
    %1098 = vdwg.mxu0
    %1099 = vst [vmem:[%s9] sm:$0xff] %v1096
    // Predicated region
    $region54: #{encoder_rnn_forward.1} parent=1 // pred_check
      _
    $region55: #{encoder_rnn_forward.1} parent=1 // pred_check_branch
      %1101 = sbr.rel (0) target = $region57
    $region56: #{encoder_rnn_forward.1} parent=1 // pred_region
      _
    $region57: #{encoder_rnn_forward.1} parent=1 // pred_fallthru
      _
    // Predicated region
    $region58: #{encoder_rnn_forward.1} parent=1 // pred_check
      _
    $region59: #{encoder_rnn_forward.1} parent=1 // pred_check_branch
      %1103 = sbr.rel (0) target = $region61
    $region60: #{encoder_rnn_forward.1} parent=1 // pred_region
      _
    $region61: #{encoder_rnn_forward.1} parent=1 // pred_fallthru
      _
    // Predicated region
    $region62: #{encoder_rnn_forward.1} parent=1 // pred_check
      _
    $region63: #{encoder_rnn_forward.1} parent=1 // pred_check_branch
      %1105 = sbr.rel (0) target = $region65
    $region64: #{encoder_rnn_forward.1} parent=1 // pred_region
      _
    $region65: #{encoder_rnn_forward.1} parent=1 // pred_fallthru
      _
    // Predicated region
    $region66: #{encoder_rnn_forward.1} parent=1 // pred_check
      _
    $region67: #{encoder_rnn_forward.1} parent=1 // pred_check_branch
      %1107 = sbr.rel (0) target = $region69
    $region68: #{encoder_rnn_forward.1} parent=1 // pred_region
      _
    $region69: #{encoder_rnn_forward.1} parent=1 // pred_fallthru
      _
    %1108 = vsyncpa [#allocation3], 1
    %1109 = vsyncpa [#allocation5], 1
    %1110 = vsyncpa [#allocation8], 1

</llo_original>
